<compile_context>
chip_gen: v7x
topology: tpu7x:2x2x1
jax: 0.10.0
libtpu: 0.0.40
codegen_flags: <defaults>
</compile_context>

<pallas_src>
import jax
import jax.numpy as jnp
from jax import lax
from jax.experimental import pallas as pl
from jax.experimental.pallas import tpu as pltpu

EPS = 1e-5


def _make_add_norm_kernel(d_real, d_pad):
    """Kernel over a (tile_rows, d_pad) tile; LayerNorm over the lane axis.
    When d_pad > d_real the trailing lanes are zero padding and are masked out
    of the statistics, so the result is an exact LayerNorm over d_real."""
    need_mask = d_pad != d_real
    inv_d = 1.0 / float(d_real)

    def kernel(x_ref, r_ref, g_ref, b_ref, o_ref):
        # x_ref, r_ref, o_ref: (tile_rows, d_pad); g_ref, b_ref: (1, d_pad)
        v = x_ref[...].astype(jnp.float32) + r_ref[...].astype(jnp.float32)
        if need_mask:
            lane = lax.broadcasted_iota(jnp.int32, v.shape, dimension=1)
            valid = lane < d_real
            v = jnp.where(valid, v, 0.0)
        # Two-pass mean/variance in f32 (matches nn.LayerNorm reference).
        mean = jnp.sum(v, axis=-1, keepdims=True) * inv_d
        centered = v - mean
        if need_mask:
            centered = jnp.where(valid, centered, 0.0)
        var = jnp.sum(centered * centered, axis=-1, keepdims=True) * inv_d
        y = centered * lax.rsqrt(var + EPS)
        y = y * g_ref[...].astype(jnp.float32) + b_ref[...].astype(jnp.float32)
        o_ref[...] = y.astype(o_ref.dtype)

    return kernel


def _vmem_capacity_bytes():
    try:
        return int(pltpu.get_tpu_info().vmem_capacity_bytes)
    except Exception:
        return 128 << 20  # conservative default: assume a 128 MiB part


def _choose_tile_rows(rows, d_pad, in_itemsize, out_itemsize,
                      vmem_budget_bytes, *, min_grid_steps=4):
    """Largest row tile that (a) fits the double-buffered VMEM budget,
    (b) respects sublane packing (8 rows f32 / 16 rows for 16-bit dtypes),
    (c) yields >= 2 (target `min_grid_steps`) grid steps whenever rows allow
    it, so v7x's two TensorCores are both used and DMA/compute overlap, and
    (d) divides `rows` exactly when possible (no masked edge block)."""
    align = 8 if (in_itemsize >= 4 and out_itemsize >= 4) else 16
    # Live VMEM per row ~= double-buffered x/residual inputs + output + ~3 f32
    # compute temps (v, centered, y can be co-live for bf16 inputs).
    per_row_bytes = (4 * in_itemsize + 2 * out_itemsize + 3 * 4) * d_pad
    cap = max(align, int(vmem_budget_bytes) // max(per_row_bytes, 1))
    cap = max(align, (cap // align) * align)

    # Multi-step guarantee: if we can carve at least 2 aligned tiles, do so.
    n_aligned_tiles = rows // align
    steps = min(min_grid_steps, n_aligned_tiles)
    if steps >= 2:
        cap = min(cap, max(align, (rows // steps) // align * align))

    tile = min(cap, rows)
    if tile >= rows:
        return rows  # full-extent block is always a legal block shape
    if rows % tile != 0:
        for t in range(tile, align - 1, -align):
            if rows % t == 0:
                return t  # exact tiling, no masked edge block
    return tile  # fallback: cdiv grid, Pallas masks the partial edge block


def add_norm(x, residual, gamma, beta, *, out_dtype=None, tile_rows=None,
             vmem_budget_bytes=None, dropout_p=0.0, alias_x=False):
    """x, residual: (B, S, D); gamma, beta: (D,). Returns (B, S, D)."""
    # TODO(synk): dropout_p > 0 would need pltpu.prng_seed/prng_random_bits
    # masking inside the kernel; the module default p=0.0 is an identity.
    assert dropout_p == 0.0, "dropout_p != 0 not implemented in this kernel"

    B, S, D = x.shape
    rows = B * S
    out_dtype = jnp.dtype(x.dtype if out_dtype is None else out_dtype)
    in_itemsize = jnp.dtype(x.dtype).itemsize
    out_itemsize = out_dtype.itemsize

    # Lane-dense output: pad d_model up to a multiple of 128.
    d_pad = -(-D // 128) * 128

    # Generation-aware VMEM policy.
    cap_bytes = _vmem_capacity_bytes()
    headroom = 4 << 20
    if cap_bytes >= (96 << 20):            # 128 MiB parts (v5e / v6e)
        limit_ceiling = 96 << 20
        default_budget = 64 << 20
    else:                                  # 64 MiB-per-TC parts (v7x)
        limit_ceiling = max(16 << 20, min(48 << 20, cap_bytes * 3 // 4))
        default_budget = max(8 << 20, min(24 << 20, limit_ceiling // 2))
    budget = default_budget if vmem_budget_bytes is None else int(vmem_budget_bytes)
    # Tiles are never sized past what the compiler limit can actually hold.
    budget = max(1 << 20, min(budget, limit_ceiling - headroom))

    if tile_rows is None:
        tile_rows = _choose_tile_rows(rows, d_pad, in_itemsize, out_itemsize, budget)
    tile_rows = max(1, min(int(tile_rows), rows))

    x2 = x.reshape(rows, D)
    r2 = residual.reshape(rows, D)
    g2 = gamma.reshape(1, D)
    b2 = beta.reshape(1, D)
    if d_pad != D:
        pad = ((0, 0), (0, d_pad - D))
        x2 = jnp.pad(x2, pad)
        r2 = jnp.pad(r2, pad)
        g2 = jnp.pad(g2, pad)
        b2 = jnp.pad(b2, pad)

    grid = (pl.cdiv(rows, tile_rows),)

    # Scoped-VMEM request: double-buffered I/O tiles + f32 temps + headroom.
    tile_in_bytes = tile_rows * d_pad * in_itemsize
    tile_out_bytes = tile_rows * d_pad * out_itemsize
    vmem_bytes = (4 * tile_in_bytes + 2 * tile_out_bytes
                  + 3 * tile_rows * d_pad * 4 + 4 * d_pad * 4 + headroom)
    vmem_limit = int(min(max(vmem_bytes, 16 << 20), limit_ceiling))

    io_aliases = {}
    if alias_x and out_dtype == jnp.dtype(x.dtype):
        io_aliases = {0: 0}  # reuse x's buffer when the caller donates it

    out = pl.pallas_call(
        _make_add_norm_kernel(D, d_pad),
        out_shape=jax.ShapeDtypeStruct((rows, d_pad), out_dtype),
        grid_spec=pltpu.PrefetchScalarGridSpec(
            num_scalar_prefetch=0,
            grid=grid,
            in_specs=[
                pl.BlockSpec((tile_rows, d_pad), lambda i: (i, 0)),
                pl.BlockSpec((tile_rows, d_pad), lambda i: (i, 0)),
                pl.BlockSpec((1, d_pad), lambda i: (0, 0)),
                pl.BlockSpec((1, d_pad), lambda i: (0, 0)),
            ],
            out_specs=pl.BlockSpec((tile_rows, d_pad), lambda i: (i, 0)),
        ),
        compiler_params=pltpu.CompilerParams(
            dimension_semantics=("parallel",),
            vmem_limit_bytes=vmem_limit,
        ),
        input_output_aliases=io_aliases,
    )(x2, r2, g2, b2)

    if d_pad != D:
        out = out[:, :D]
    # NOTE: the best further win is fusing this AddNorm into the producing
    # matmul's epilogue (apply add+LN on its output tile before HBM writeback)
    # to remove ~2/3 of the HBM traffic of this purely bandwidth-bound op.
    return out.reshape(B, S, D)


def add_norm_ref(x, residual, gamma, beta):
    v = x.astype(jnp.float32) + residual.astype(jnp.float32)
    mean = jnp.mean(v, axis=-1, keepdims=True)
    var = jnp.mean((v - mean) ** 2, axis=-1, keepdims=True)
    y = (v - mean) * lax.rsqrt(var + EPS) * gamma.astype(jnp.float32) + beta.astype(jnp.float32)
    return y


if __name__ == "__main__":
    B, S, D = 2, 8, 32  # batch=2, seq=8, d_model=32 (exercises the D%128 pad+mask path)

    key = jax.random.PRNGKey(0)
    kx, kr = jax.random.split(key)
    x = jax.random.normal(kx, (B, S, D), dtype=jnp.float32)
    residual = jax.random.normal(kr, (B, S, D), dtype=jnp.float32)

    # nn.LayerNorm((d_model,)) default init: weight = ones, bias = zeros.
    gamma = jnp.ones((D,), dtype=jnp.float32)
    beta = jnp.zeros((D,), dtype=jnp.float32)

    ref = add_norm_ref(x, residual, gamma, beta)

    # f32 path (matches the PyTorch module defaults); multi-step grid on f32.
    out = jax.block_until_ready(add_norm(x, residual, gamma, beta))
    assert out.shape == (B, S, D) and out.dtype == x.dtype
    assert jnp.allclose(out, ref.astype(x.dtype), atol=1e-4, rtol=1e-4)

    # bf16 end-to-end (recommended for production: halves HBM traffic).
    xb = x.astype(jnp.bfloat16)
    rb = residual.astype(jnp.bfloat16)
    outb = jax.block_until_ready(add_norm(xb, rb, gamma, beta))
    refb = add_norm_ref(xb, rb, gamma, beta)
    assert outb.dtype == jnp.bfloat16
    assert jnp.allclose(outb.astype(jnp.float32), refb, atol=5e-2, rtol=5e-2)

    # f32-in / bf16-out path (explicit out_dtype).
    outm = jax.block_until_ready(
        add_norm(x, residual, gamma, beta, out_dtype=jnp.bfloat16))
    assert outm.dtype == jnp.bfloat16
    assert jnp.allclose(outm.astype(jnp.float32), ref, atol=5e-2, rtol=5e-2)

    print("KERNEL_OK")
</pallas_src>

<mosaic_0001>
module attributes {stable_mosaic.version = 11 : i64} {
  func.func @kernel(%arg0: i32, %arg1: memref<8x128xf32, #tpu.memory_space<vmem>>, %arg2: memref<8x128xf32, #tpu.memory_space<vmem>>, %arg3: memref<1x128xf32, #tpu.memory_space<vmem>>, %arg4: memref<1x128xf32, #tpu.memory_space<vmem>>, %arg5: memref<8x128xf32, #tpu.memory_space<vmem>>) attributes {dimension_semantics = [#tpu.dimension_semantics<parallel>], iteration_bounds = array<i64: 2>, scalar_prefetch = 0 : i64, scratch_operands = 0 : i64, tpu.core_type = #tpu.core_type<tc>, window_params = [{transform_indices = @transform_0, window_bounds = array<i64: 8, 128>}, {transform_indices = @transform_1, window_bounds = array<i64: 8, 128>}, {pipeline_mode = #tpu.pipeline_mode<synchronous>, transform_indices = @transform_2, window_bounds = array<i64: 1, 128>}, {pipeline_mode = #tpu.pipeline_mode<synchronous>, transform_indices = @transform_3, window_bounds = array<i64: 1, 128>}, {transform_indices = @transform_4, window_bounds = array<i64: 8, 128>}]} {
    %c0 = arith.constant 0 : index
    %c0_0 = arith.constant 0 : index
    %0 = vector.load %arg1[%c0, %c0_0] : memref<8x128xf32, #tpu.memory_space<vmem>>, vector<8x128xf32>
    %c0_1 = arith.constant 0 : index
    %c0_2 = arith.constant 0 : index
    %1 = vector.load %arg2[%c0_1, %c0_2] : memref<8x128xf32, #tpu.memory_space<vmem>>, vector<8x128xf32>
    %2 = arith.addf %0, %1 : vector<8x128xf32>
    %3 = tpu.iota {dimensions = array<i32: 1>} : vector<8x128xi32>
    %c32_i32 = arith.constant 32 : i32
    %4 = vector.broadcast %c32_i32 : i32 to vector<8x128xi32>
    %5 = arith.cmpi slt, %3, %4 : vector<8x128xi32>
    %cst = arith.constant 0.000000e+00 : f32
    %6 = vector.broadcast %cst : f32 to vector<8x128xf32>
    %7 = arith.select %5, %2, %6 : vector<8x128xi1>, vector<8x128xf32>
    %cst_3 = arith.constant dense<0.000000e+00> : vector<8xf32>
    %8 = vector.multi_reduction <add>, %7, %cst_3 [1] : vector<8x128xf32> to vector<8xf32>
    %9 = vector.shape_cast %8 : vector<8xf32> to vector<8x1xf32>
    %cst_4 = arith.constant 3.125000e-02 : f32
    %10 = vector.broadcast %cst_4 : f32 to vector<8x1xf32>
    %11 = arith.mulf %9, %10 : vector<8x1xf32>
    %12 = vector.broadcast %11 : vector<8x1xf32> to vector<8x128xf32>
    %13 = arith.subf %7, %12 : vector<8x128xf32>
    %cst_5 = arith.constant 0.000000e+00 : f32
    %14 = vector.broadcast %cst_5 : f32 to vector<8x128xf32>
    %15 = arith.select %5, %13, %14 : vector<8x128xi1>, vector<8x128xf32>
    %16 = arith.mulf %15, %15 : vector<8x128xf32>
    %cst_6 = arith.constant dense<0.000000e+00> : vector<8xf32>
    %17 = vector.multi_reduction <add>, %16, %cst_6 [1] : vector<8x128xf32> to vector<8xf32>
    %18 = vector.shape_cast %17 : vector<8xf32> to vector<8x1xf32>
    %cst_7 = arith.constant 3.125000e-02 : f32
    %19 = vector.broadcast %cst_7 : f32 to vector<8x1xf32>
    %20 = arith.mulf %18, %19 : vector<8x1xf32>
    %cst_8 = arith.constant 9.99999974E-6 : f32
    %21 = vector.broadcast %cst_8 : f32 to vector<8x1xf32>
    %22 = arith.addf %20, %21 : vector<8x1xf32>
    %23 = math.rsqrt %22 : vector<8x1xf32>
    %24 = vector.broadcast %23 : vector<8x1xf32> to vector<8x128xf32>
    %25 = arith.mulf %15, %24 : vector<8x128xf32>
    %c0_9 = arith.constant 0 : index
    %c0_10 = arith.constant 0 : index
    %26 = vector.load %arg3[%c0_9, %c0_10] : memref<1x128xf32, #tpu.memory_space<vmem>>, vector<1x128xf32>
    %27 = vector.broadcast %26 : vector<1x128xf32> to vector<8x128xf32>
    %28 = arith.mulf %25, %27 : vector<8x128xf32>
    %c0_11 = arith.constant 0 : index
    %c0_12 = arith.constant 0 : index
    %29 = vector.load %arg4[%c0_11, %c0_12] : memref<1x128xf32, #tpu.memory_space<vmem>>, vector<1x128xf32>
    %30 = vector.broadcast %29 : vector<1x128xf32> to vector<8x128xf32>
    %31 = arith.addf %28, %30 : vector<8x128xf32>
    %c0_13 = arith.constant 0 : index
    %c0_14 = arith.constant 0 : index
    %32 = vector.load %arg5[%c0_13, %c0_14] : memref<8x128xf32, #tpu.memory_space<vmem>>, vector<8x128xf32>
    tpu.vector_store %arg5[%c0_13, %c0_14], %31 {strides = array<i32>} : memref<8x128xf32, #tpu.memory_space<vmem>>, vector<8x128xf32>,
    return
  }
  func.func @transform_0(%arg0: i32) -> (i32, i32) {
    %c0_i32 = arith.constant 0 : i32
    %c0_i32_0 = arith.constant 0 : i32
    return %arg0, %c0_i32 : i32, i32
  }
  func.func @transform_1(%arg0: i32) -> (i32, i32) {
    %c0_i32 = arith.constant 0 : i32
    %c0_i32_0 = arith.constant 0 : i32
    return %arg0, %c0_i32 : i32, i32
  }
  func.func @transform_2(%arg0: i32) -> (i32, i32) {
    %c0_i32 = arith.constant 0 : i32
    %c0_i32_0 = arith.constant 0 : i32
    %c0_i32_1 = arith.constant 0 : i32
    return %c0_i32, %c0_i32_0 : i32, i32
  }
  func.func @transform_3(%arg0: i32) -> (i32, i32) {
    %c0_i32 = arith.constant 0 : i32
    %c0_i32_0 = arith.constant 0 : i32
    %c0_i32_1 = arith.constant 0 : i32
    return %c0_i32, %c0_i32_0 : i32, i32
  }
  func.func @transform_4(%arg0: i32) -> (i32, i32) {
    %c0_i32 = arith.constant 0 : i32
    %c0_i32_0 = arith.constant 0 : i32
    return %arg0, %c0_i32 : i32, i32
  }
}

</mosaic_0001>

<llo_original>
// kernel: tpu_custom_call.1
$region0: #{tpu_custom_call.1}
  #allocation0 [shape = 'u32[]', space=smem, size = 0x4, offset = 0x4, fixed_abs, tag = 'smem constant byte address 0x4 - core index']
  #allocation1 [shape = 'u32[144,128]{1,0:T(1,128)}', space=vmem, size = 0x12000, scoped, tag = 'internal scratch']
  %s0 = inlined_call_operand.hbm [shape: f32[16,128], index: 0, kind: input, shape index: {}]
  %s1 = inlined_call_operand.hbm [shape: f32[16,128], index: 1, kind: input, shape index: {}]
  %s2 = inlined_call_operand.vmem [shape: f32[1,128], index: 2, kind: input, shape index: {}]
  %s3 = inlined_call_operand.vmem [shape: f32[1,128], index: 3, kind: input, shape index: {}]
  %s4 = inlined_call_operand.hbm [shape: f32[16,128], index: 4, kind: output, shape index: {}]
  %s5 = sld [smem:[#allocation0]]
  $region57: #{tpu_custom_call.1} parent=0
    _
  %s7 = ssub.s32 1, %s5
  %s8 = scalar_select 0, %s7, %s5
  $region1: #{tpu_custom_call.1} parent=0
    #allocation2 [shape = 'u8[8192]{0}', space=vmem, size = 0x2000, scoped, tag = 'input window, operand 0']
    #allocation3 [shape = 's32[2]{0}', space=sflag, size = 0x8, scoped, tag = 'scoped memory for tpu_custom_call.1']
    #allocation4 [shape = 's32[2]{0}', space=sflag, size = 0x8, scoped, tag = 'scoped memory for tpu_custom_call.1']
    #allocation5 [shape = 'u8[8192]{0}', space=vmem, size = 0x2000, scoped, tag = 'input window, operand 1']
    #allocation6 [shape = 's32[2]{0}', space=sflag, size = 0x8, scoped, tag = 'scoped memory for tpu_custom_call.1']
    #allocation7 [shape = 'u8[8192]{0}', space=vmem, size = 0x2000, scoped, tag = 'output window, operand 0']
    %9 = vsyncpa [#allocation3], 0
    %s10 = scalar_lea.sflag [#allocation3], 1
    %11 = vsyncpa %s10, 0
    %12 = vsyncpa [#allocation6], 0
    %s13 = scalar_lea.sflag [#allocation6], 1
    %14 = vsyncpa %s13, 0
    %15 = vsyncpa [#allocation4], 0
    %s16 = scalar_lea.sflag [#allocation4], 1
    %17 = vsyncpa %s16, 0
    loop: start=0, step=1, limit=4
    $region2: #{tpu_custom_call.1} parent=1 // loop_pre_header
      _
    $region3: #{tpu_custom_call.1} parent=1 // loop_header
      %s19 = sphi 0, %s23
      %p20 = scmp.ge.s32.totalorder %s19, 4
      %s29 = sphi 0, %s31
      %s32 = sphi 0, %s29
      %s33 = sphi 0, %s32
      %s49 = sphi 0, %s33
      %s55 = sphi 0, %s57
      %s58 = sphi 0, %s55
      %s59 = sphi 0, %s58
      %s75 = sphi 0, %s59
      %s79 = sphi 0, %s79
      %s81 = sphi 0, %s79
      %s82 = sphi 0, %s81
      %s96 = sphi 0, %s82
      %s100 = sphi 0, %s100
      %s102 = sphi 0, %s100
      %s103 = sphi 0, %s102
      %s117 = sphi 0, %s103
      %s123 = sphi 0, %s125
      %s126 = sphi 0, %s123
      %s127 = sphi 0, %s126
      %s143 = sphi 0, %s127
    $region4: #{tpu_custom_call.1} parent=1 // loop_header_branch
      %22 = sbr.rel (%p20) target = $region8
    $region5: #{tpu_custom_call.1} parent=1 // loop_body
      %s24 = ssub.s32 %s19, 1
      %s25 = ssub.s32 %s19, 2
      %s26 = sadd.s32 %s19, 1
      %s27 = ssub.s32 %s19, %s26
      %p28 = scmp.eq.s32.totalorder %s27, 0
      %s30 = sadd.s32 %s29, 1
      %s31 = scalar_select %p28, %s29, %s30
      %p34 = pneg %p28
      %p35 = scmp.eq.s32.totalorder %s19, 1
      %p36 = por %p34, %p35
      %p37 = scmp.ne.s32.totalorder %s29, %s32
      %p38 = scmp.eq.s32.totalorder %s19, 0
      %p39 = por %p37, %p38
      %p40 = scmp.ne.s32.totalorder %s29, %s32
      %p41 = scmp.eq.s32.totalorder %s24, 1
      %p42 = por %p40, %p41
      %p43 = scmp.ne.s32.totalorder %s32, %s33
      %p44 = scmp.eq.s32.totalorder %s24, 0
      %p45 = por %p43, %p44
      %p46 = scmp.ne.s32.totalorder %s32, %s33
      %p47 = scmp.eq.s32.totalorder %s25, 1
      %p48 = por %p46, %p47
      %p50 = scmp.ne.s32.totalorder %s33, %s49
      %p51 = scmp.eq.s32.totalorder %s25, 0
      %p52 = por %p50, %p51
      %s53 = ssub.s32 %s19, %s26
      %p54 = scmp.eq.s32.totalorder %s53, 0
      %s56 = sadd.s32 %s55, 1
      %s57 = scalar_select %p54, %s55, %s56
      %p60 = pneg %p54
      %p61 = scmp.eq.s32.totalorder %s19, 1
      %p62 = por %p60, %p61
      %p63 = scmp.ne.s32.totalorder %s55, %s58
      %p64 = scmp.eq.s32.totalorder %s19, 0
      %p65 = por %p63, %p64
      %p66 = scmp.ne.s32.totalorder %s55, %s58
      %p67 = scmp.eq.s32.totalorder %s24, 1
      %p68 = por %p66, %p67
      %p69 = scmp.ne.s32.totalorder %s58, %s59
      %p70 = scmp.eq.s32.totalorder %s24, 0
      %p71 = por %p69, %p70
      %p72 = scmp.ne.s32.totalorder %s58, %s59
      %p73 = scmp.eq.s32.totalorder %s25, 1
      %p74 = por %p72, %p73
      %p76 = scmp.ne.s32.totalorder %s59, %s75
      %p77 = scmp.eq.s32.totalorder %s25, 0
      %p78 = por %p76, %p77
      %s80 = sadd.s32 %s79, 1
      %p83 = scmp.eq.s32.totalorder %s19, 1
      %p84 = scmp.ne.s32.totalorder %s79, %s81
      %p85 = scmp.eq.s32.totalorder %s19, 0
      %p86 = por %p84, %p85
      %p87 = scmp.ne.s32.totalorder %s79, %s81
      %p88 = scmp.eq.s32.totalorder %s24, 1
      %p89 = por %p87, %p88
      %p90 = scmp.ne.s32.totalorder %s81, %s82
      %p91 = scmp.eq.s32.totalorder %s24, 0
      %p92 = por %p90, %p91
      %p93 = scmp.ne.s32.totalorder %s81, %s82
      %p94 = scmp.eq.s32.totalorder %s25, 1
      %p95 = por %p93, %p94
      %p97 = scmp.ne.s32.totalorder %s82, %s96
      %p98 = scmp.eq.s32.totalorder %s25, 0
      %p99 = por %p97, %p98
      %s101 = sadd.s32 %s100, 1
      %p104 = scmp.eq.s32.totalorder %s19, 1
      %p105 = scmp.ne.s32.totalorder %s100, %s102
      %p106 = scmp.eq.s32.totalorder %s19, 0
      %p107 = por %p105, %p106
      %p108 = scmp.ne.s32.totalorder %s100, %s102
      %p109 = scmp.eq.s32.totalorder %s24, 1
      %p110 = por %p108, %p109
      %p111 = scmp.ne.s32.totalorder %s102, %s103
      %p112 = scmp.eq.s32.totalorder %s24, 0
      %p113 = por %p111, %p112
      %p114 = scmp.ne.s32.totalorder %s102, %s103
      %p115 = scmp.eq.s32.totalorder %s25, 1
      %p116 = por %p114, %p115
      %p118 = scmp.ne.s32.totalorder %s103, %s117
      %p119 = scmp.eq.s32.totalorder %s25, 0
      %p120 = por %p118, %p119
      %s121 = ssub.s32 %s19, %s26
      %p122 = scmp.eq.s32.totalorder %s121, 0
      %s124 = sadd.s32 %s123, 1
      %s125 = scalar_select %p122, %s123, %s124
      %p128 = pneg %p122
      %p129 = scmp.eq.s32.totalorder %s19, 1
      %p130 = por %p128, %p129
      %p131 = scmp.ne.s32.totalorder %s123, %s126
      %p132 = scmp.eq.s32.totalorder %s19, 0
      %p133 = por %p131, %p132
      %p134 = scmp.ne.s32.totalorder %s123, %s126
      %p135 = scmp.eq.s32.totalorder %s24, 1
      %p136 = por %p134, %p135
      %p137 = scmp.ne.s32.totalorder %s126, %s127
      %p138 = scmp.eq.s32.totalorder %s24, 0
      %p139 = por %p137, %p138
      %p140 = scmp.ne.s32.totalorder %s126, %s127
      %p141 = scmp.eq.s32.totalorder %s25, 1
      %p142 = por %p140, %p141
      %p144 = scmp.ne.s32.totalorder %s127, %s143
      %p145 = scmp.eq.s32.totalorder %s25, 0
      %p146 = por %p144, %p145
      %p147 = scmp.le.s32.totalorder 1, %s19
      %p148 = scmp.lt.s32.totalorder %s19, 3
      %p149 = pnand %p147, %p148
      %p150 = pneg %p149
      // Predicated region
      $region9: #{tpu_custom_call.1} parent=5 // pred_check
        _
      $region10: #{tpu_custom_call.1} parent=5 // pred_check_branch
        %152 = sbr.rel (%p149) target = $region12
      $region11: #{tpu_custom_call.1} parent=5 // pred_region
        %s153 = ssub.s32 %s19, 1
        // Predicated region
        $region13: #{tpu_custom_call.1} parent=11 // pred_check
          %p154 = pneg %p92
        $region14: #{tpu_custom_call.1} parent=11 // pred_check_branch
          %156 = sbr.rel (%p154) target = $region16
        $region15: #{tpu_custom_call.1} parent=11 // pred_region
          _
        $region16: #{tpu_custom_call.1} parent=11 // pred_fallthru
          _
        // Predicated region
        $region17: #{tpu_custom_call.1} parent=11 // pred_check
          %p157 = pneg %p113
        $region18: #{tpu_custom_call.1} parent=11 // pred_check_branch
          %159 = sbr.rel (%p157) target = $region20
        $region19: #{tpu_custom_call.1} parent=11 // pred_region
          _
        $region20: #{tpu_custom_call.1} parent=11 // pred_fallthru
          _
      $region12: #{tpu_custom_call.1} parent=5 // pred_fallthru
        _
      %p160 = scmp.lt.s32.totalorder %s19, 2
      // Predicated region
      $region21: #{tpu_custom_call.1} parent=5 // pred_check
        %p161 = pneg %p160
      $region22: #{tpu_custom_call.1} parent=5 // pred_check_branch
        %163 = sbr.rel (%p161) target = $region24
      $region23: #{tpu_custom_call.1} parent=5 // pred_region
        // Predicated region
        $region25: #{tpu_custom_call.1} parent=23 // pred_check
          %p164 = pneg %p39
        $region26: #{tpu_custom_call.1} parent=23 // pred_check_branch
          %166 = sbr.rel (%p164) target = $region28
        $region27: #{tpu_custom_call.1} parent=23 // pred_region
          %s167 = sand.u32 %s29, 1
          %s168 = scalar_lea.sflag [#allocation3], %s167
          %s169 = sand.u32 %s29, 1
          %s170 = smul.addr %s169, 8
          %s171 = scalar_lea.vmem [#allocation2], %s170
          %s173 = ssub.s32 128, 128
          %174 = vsyncadd %s168, %s173
          %s175 = smul.addr %s19, 128
          %s176 = scalar_lea.hbm %s0, %s175
          %s178 = sshll.u32 %s171, 4
          %s179 = int_to_ptr.vmem [resolvable:$true] %s178
          %181 = dma.hbm_to_vmem [thread:$0]  %s176, 128, %s179, %s168
        $region28: #{tpu_custom_call.1} parent=23 // pred_fallthru
          _
        // Predicated region
        $region29: #{tpu_custom_call.1} parent=23 // pred_check
          %p182 = pneg %p65
        $region30: #{tpu_custom_call.1} parent=23 // pred_check_branch
          %184 = sbr.rel (%p182) target = $region32
        $region31: #{tpu_custom_call.1} parent=23 // pred_region
          %s185 = sand.u32 %s55, 1
          %s186 = scalar_lea.sflag [#allocation6], %s185
          %s187 = sand.u32 %s55, 1
          %s188 = smul.addr %s187, 8
          %s189 = scalar_lea.vmem [#allocation5], %s188
          %s191 = ssub.s32 128, 128
          %192 = vsyncadd %s186, %s191
          %s193 = smul.addr %s19, 128
          %s194 = scalar_lea.hbm %s1, %s193
          %s196 = sshll.u32 %s189, 4
          %s197 = int_to_ptr.vmem [resolvable:$true] %s196
          %199 = dma.hbm_to_vmem [thread:$0]  %s194, 128, %s197, %s186
        $region32: #{tpu_custom_call.1} parent=23 // pred_fallthru
          _
      $region24: #{tpu_custom_call.1} parent=5 // pred_fallthru
        _
      %p200 = scmp.le.s32.totalorder 1, %s19
      %p201 = scmp.lt.s32.totalorder %s19, 3
      %p202 = pnand %p200, %p201
      %p203 = pneg %p202
      // Predicated region
      $region33: #{tpu_custom_call.1} parent=5 // pred_check
        _
      $region34: #{tpu_custom_call.1} parent=5 // pred_check_branch
        %205 = sbr.rel (%p202) target = $region36
      $region35: #{tpu_custom_call.1} parent=5 // pred_region
        %s206 = ssub.s32 %s19, 1
        %s207 = sand.u32 %s32, 1
        %s208 = scalar_lea.sflag [#allocation3], %s207
        %s209 = sand.u32 %s32, 1
        %s210 = smul.addr %s209, 8
        %s211 = scalar_lea.vmem [#allocation2], %s210
        // Predicated region
        $region37: #{tpu_custom_call.1} parent=35 // pred_check
          %p212 = pneg %p45
        $region38: #{tpu_custom_call.1} parent=35 // pred_check_branch
          %214 = sbr.rel (%p212) target = $region40
        $region39: #{tpu_custom_call.1} parent=35 // pred_region
          %215 = dma.done %s208, 128
        $region40: #{tpu_custom_call.1} parent=35 // pred_fallthru
          _
        %s216 = sand.u32 %s58, 1
        %s217 = scalar_lea.sflag [#allocation6], %s216
        %s218 = sand.u32 %s58, 1
        %s219 = smul.addr %s218, 8
        %s220 = scalar_lea.vmem [#allocation5], %s219
        // Predicated region
        $region41: #{tpu_custom_call.1} parent=35 // pred_check
          %p221 = pneg %p71
        $region42: #{tpu_custom_call.1} parent=35 // pred_check_branch
          %223 = sbr.rel (%p221) target = $region44
        $region43: #{tpu_custom_call.1} parent=35 // pred_region
          %224 = dma.done %s217, 128
        $region44: #{tpu_custom_call.1} parent=35 // pred_fallthru
          _
        %s225 = sand.u32 %s32, 1
        %s226 = scalar_lea.sflag [#allocation3], %s225
        %s227 = sand.u32 %s32, 1
        %s228 = smul.addr %s227, 8
        %s229 = scalar_lea.vmem [#allocation2], %s228
        %p230 = pneg %p45
        %p231 = pneg %p42
        %s232 = sand.u32 %s58, 1
        %s233 = scalar_lea.sflag [#allocation6], %s232
        %s234 = sand.u32 %s58, 1
        %s235 = smul.addr %s234, 8
        %s236 = scalar_lea.vmem [#allocation5], %s235
        %p237 = pneg %p71
        %p238 = pneg %p68
        %p239 = pneg %p92
        %p240 = pneg %p89
        %p241 = pneg %p113
        %p242 = pneg %p110
        %p243 = pneg %p139
        %p244 = pneg %p136
        %s245 = sand.u32 %s126, 1
        %s246 = scalar_lea.sflag [#allocation4], %s245
        %s247 = sand.u32 %s126, 1
        %s248 = smul.addr %s247, 8
        %s249 = scalar_lea.vmem [#allocation7], %s248
        %v250 = vld [vmem:[%s211] sm:$0xff]
        %v251 = vld [vmem:[%s220] sm:$0xff]
        %v252 = vadd.f32 %v250, %v251
        %v253 = vlaneseq
        %v254 = vand.u32 %v253, 127
        %vm255 = vcmp.lt.s32.totalorder %v254, 32
        %v256 = vsel %vm255, %v252, 0.0
        %257 = vadd.xlane.f32.xlu0 %v256
        %v258 = vpop.xlane.xlu0 %257
        %v259 = vmul.f32 %v258, 0.03125
        %v260 = vsub.f32 %v256, %v259
        %v261 = vsel %vm255, %v260, 0.0
        %v262 = vmul.f32 %v261, %v261
        %263 = vadd.xlane.f32.xlu0 %v262
        %v264 = vpop.xlane.xlu0 %263
        %v265 = vmul.f32 %v264, 0.03125
        %v266 = vadd.f32 %v265, 1e-05
        %v267 = vrsqrt.pop %v266
        %v268 = vmul.f32 %v261, %v267
        %v269 = vld [vmem:[%s2] sm:$0x1]
        %v271 = vlaneseq
        %v272 = vshrl.u32 %v271, 7
        %v273 = vsub.s32 0, %v272
        %v274 = vrot.slane %v269, %v273
        %v276 = vmul.f32 %v268, %v274
        %v277 = vld [vmem:[%s3] sm:$0x1]
        %v279 = vlaneseq
        %v280 = vshrl.u32 %v279, 7
        %v281 = vsub.s32 0, %v280
        %v282 = vrot.slane %v277, %v281
        %v284 = vadd.f32 %v276, %v282
        %285 = vst [vmem:[%s249] sm:$0xff] %v284
        %s286 = sand.u32 %s126, 1
        %s287 = scalar_lea.sflag [#allocation4], %s286
        %s288 = sand.u32 %s126, 1
        %s289 = smul.addr %s288, 8
        %s290 = scalar_lea.vmem [#allocation7], %s289
        // Predicated region
        $region45: #{tpu_custom_call.1} parent=35 // pred_check
          %p291 = pneg %p136
        $region46: #{tpu_custom_call.1} parent=35 // pred_check_branch
          %293 = sbr.rel (%p291) target = $region48
        $region47: #{tpu_custom_call.1} parent=35 // pred_region
          %s295 = ssub.s32 128, 128
          %296 = vsyncadd %s287, %s295
          %s297 = smul.addr %s24, 128
          %s298 = scalar_lea.hbm %s4, %s297
          %s300 = sshll.u32 %s290, 4
          %s301 = int_to_ptr.vmem [resolvable:$true] %s300
          %303 = dma.vmem_to_hbm [thread:$0]  %s301, 128, %s298, %s287
        $region48: #{tpu_custom_call.1} parent=35 // pred_fallthru
          _
      $region36: #{tpu_custom_call.1} parent=5 // pred_fallthru
        _
      %p304 = scmp.le.s32.totalorder 2, %s19
      // Predicated region
      $region49: #{tpu_custom_call.1} parent=5 // pred_check
        %p305 = pneg %p304
      $region50: #{tpu_custom_call.1} parent=5 // pred_check_branch
        %307 = sbr.rel (%p305) target = $region52
      $region51: #{tpu_custom_call.1} parent=5 // pred_region
        %s308 = ssub.s32 %s19, 2
        // Predicated region
        $region53: #{tpu_custom_call.1} parent=51 // pred_check
          %p309 = pneg %p142
        $region54: #{tpu_custom_call.1} parent=51 // pred_check_branch
          %311 = sbr.rel (%p309) target = $region56
        $region55: #{tpu_custom_call.1} parent=51 // pred_region
          %s312 = sand.u32 %s127, 1
          %s313 = scalar_lea.sflag [#allocation4], %s312
          %s314 = sand.u32 %s127, 1
          %s315 = smul.addr %s314, 8
          %s316 = scalar_lea.vmem [#allocation7], %s315
          %317 = dma.done %s313, 128
        $region56: #{tpu_custom_call.1} parent=51 // pred_fallthru
          _
      $region52: #{tpu_custom_call.1} parent=5 // pred_fallthru
        _
    $region6: #{tpu_custom_call.1} parent=1 // loop_footer
      %s23 = sadd.s32 1, %s19
    $region7: #{tpu_custom_call.1} parent=1 // loop_footer_branch
      %18 = sbr.rel target = $region3
    $region8: #{tpu_custom_call.1} parent=1 // loop_exit
      _
    %318 = vsyncpa [#allocation3], 1
    %s319 = scalar_lea.sflag [#allocation3], 1
    %320 = vsyncpa %s319, 1
    %321 = vsyncpa [#allocation6], 1
    %s322 = scalar_lea.sflag [#allocation6], 1
    %323 = vsyncpa %s322, 1
    %324 = vsyncpa [#allocation4], 1
    %s325 = scalar_lea.sflag [#allocation4], 1
    %326 = vsyncpa %s325, 1

</llo_original>
